<compile_context>
chip_gen: v6e
topology: v6e:2x2x1
jax: 0.10.0
libtpu: 0.0.40
codegen_flags: <defaults>
</compile_context>

<pallas_src>
import math
from typing import NamedTuple

import jax
import jax.numpy as jnp
from jax import lax
from jax.experimental import pallas as pl
from jax.experimental.pallas import tpu as pltpu


def _round_up(x, m):
    return ((x + m - 1) // m) * m


def _min_row_tile(mm_dtype):
    """Dtype-aware minimum sublane tile: f32 -> 8, bf16 -> 16, 8-bit -> 32."""
    return {4: 8, 2: 16, 1: 32}[jnp.dtype(mm_dtype).itemsize]


def _vmem_capacity_bytes():
    """Physical VMEM of this chip; conservative (v7x) fallback if unknown."""
    try:
        info = pltpu.get_tpu_info()
        cap = getattr(info, "vmem_capacity_bytes", None)
        if cap:
            return int(cap)
    except Exception:
        pass
    return 64 * 1024 * 1024


def _tile_vmem_bytes(br, tk, p_pad, mm_bytes, out_bytes):
    """Explicit VMEM footprint of one grid step's buffers."""
    return (2 * br * tk * mm_bytes           # x tile (double-buffered)
            + 2 * tk * p_pad * mm_bytes      # W1 tile (double-buffered)
            + 1 * p_pad * p_pad * mm_bytes   # W2 (invariant, Buffered(1))
            + 8 * p_pad * 4                  # packed params (sublane-padded)
            + 2 * br * p_pad * out_bytes     # output tile (double-buffered)
            + br * p_pad * 4)                # f32 accumulator scratch


def _make_kernel(p_real, p_pad, mm_dtype):
    """Fused kernel; p_real / p_pad / mm_dtype are compile-time Python."""
    inv_sqrt2 = 1.0 / math.sqrt(2.0)

    def kernel(x_ref, w1_ref, w2_ref, params_ref, o_ref, acc_ref):
        k = pl.program_id(1)

        partial = jnp.dot(x_ref[...], w1_ref[...],
                          preferred_element_type=jnp.float32)

        @pl.when(k == 0)
        def _():
            acc_ref[...] = partial            # direct write: no zero-init pass

        @pl.when(k > 0)
        def _():
            acc_ref[...] += partial

        @pl.when(k == pl.num_programs(1) - 1)
        def _():
            b1 = params_ref[0:1, :]
            b2 = params_ref[1:2, :]
            gamma = params_ref[2:3, :]
            beta = params_ref[3:4, :]

            proj = acc_ref[...] + b1                      # (br, p_pad) f32

            # Exact erf GELU (PyTorch nn.GELU default).
            h = 0.5 * proj * (1.0 + lax.erf(proj * inv_sqrt2))

            # fc + residual (second matmul in mm_dtype, f32 accumulation).
            y = jnp.dot(h.astype(mm_dtype), w2_ref[...],
                        preferred_element_type=jnp.float32)
            y = y + b2 + proj

            # LayerNorm over the *real* feature columns (eps=1e-5, biased var,
            # like PyTorch).  NOTE: correctness relies on the wrapper zero-
            # padding the W1/W2/bias pad columns — padded columns of y are then
            # exactly zero, so the unmasked first moment is correct and only
            # the second moment needs masking.
            inv_p = 1.0 / float(p_real)
            mean = jnp.sum(y, axis=-1, keepdims=True) * inv_p
            centered = y - mean
            if p_pad != p_real:
                lane = lax.broadcasted_iota(jnp.int32, centered.shape, 1)
                sq = jnp.where(lane < p_real, centered * centered, 0.0)
            else:
                sq = centered * centered
            var = jnp.sum(sq, axis=-1, keepdims=True) * inv_p
            y_norm = centered * lax.rsqrt(var + 1e-5)
            o_ref[...] = (y_norm * gamma + beta).astype(o_ref.dtype)

    return kernel


class PreparedParams(NamedTuple):
    w1: jax.Array       # (e_pad, p_pad) in matmul_dtype, zero-padded
    w2: jax.Array       # (p_pad, p_pad) in matmul_dtype, zero-padded
    packed: jax.Array   # (4, p_pad) f32: b1, b2, gamma, beta
    e: int
    p: int
    matmul_dtype: object


def prepare_projection_params(w1, b1, w2, b2, gamma, beta, *,
                              matmul_dtype=jnp.bfloat16):
    """Pad / cast parameters once (hoisted out of the per-call hot path)."""
    e, p = w1.shape
    e_pad = _round_up(e, 128)
    p_pad = _round_up(p, 128)
    w1p = jnp.zeros((e_pad, p_pad), matmul_dtype).at[:e, :p].set(
        w1.astype(matmul_dtype))
    w2p = jnp.zeros((p_pad, p_pad), matmul_dtype).at[:p, :p].set(
        w2.astype(matmul_dtype))
    packed = jnp.zeros((4, p_pad), jnp.float32)
    packed = packed.at[0, :p].set(b1.astype(jnp.float32))
    packed = packed.at[1, :p].set(b2.astype(jnp.float32))
    packed = packed.at[2, :p].set(gamma.astype(jnp.float32))
    packed = packed.at[3, :p].set(beta.astype(jnp.float32))
    return PreparedParams(w1p, w2p, packed, e, p, matmul_dtype)


def projection_head_prepared(x, prepared: PreparedParams, *,
                             block_rows=512, block_k=512, out_dtype=None):
    """Fused projection head with pre-padded / pre-cast parameters.

    x: (N, E).  Weights are stored (in, out) so the kernel computes x @ W + b.
    Returns (N, P) in out_dtype (defaults to x.dtype; pass jnp.bfloat16 to
    halve store traffic, e.g. on v5e's single vector-store slot).
    """
    w1p, w2p, packed, e, p, mm_dtype = prepared
    n = x.shape[0]
    assert x.shape[1] == e, "x feature dim mismatch"
    out_dtype = out_dtype if out_dtype is not None else x.dtype

    e_pad, p_pad = w1p.shape
    mm_bytes = jnp.dtype(mm_dtype).itemsize
    out_bytes = jnp.dtype(out_dtype).itemsize

    # --- row tiling: dtype-aware sublane minimum; no forced small-N split ----
    min_rows = _min_row_tile(mm_dtype)
    n_min = _round_up(n, min_rows)
    br = max(min_rows, min(_round_up(block_rows, min_rows), n_min))

    # --- K (embedding) tiling: multiple of 128 that divides e_pad ------------
    tk = min(e_pad, _round_up(block_k, 128))
    while e_pad % tk:
        tk -= 128

    # --- VMEM budget: shrink br (then tk) until the tiles fit ---------------
    cap = max(32 * 1024 * 1024, _vmem_capacity_bytes() - 16 * 1024 * 1024)

    def _fits(br_, tk_):
        return _tile_vmem_bytes(br_, tk_, p_pad, mm_bytes, out_bytes) <= cap

    while not _fits(br, tk) and br > min_rows:
        br = max(min_rows, (br // 2 // min_rows) * min_rows)
    while not _fits(br, tk) and tk > 128:
        tk_new = tk - 128
        while e_pad % tk_new:
            tk_new -= 128
        tk = tk_new
    # TODO(synk): for very large P (>= ~4096) the resident bf16 W2 alone can
    # exceed v7x VMEM; stream W2 row tiles in the epilogue instead.

    n_pad = _round_up(n, br)
    k_tiles = e_pad // tk
    grid = (n_pad // br, k_tiles)

    vmem_need = _tile_vmem_bytes(br, tk, p_pad, mm_bytes, out_bytes)
    vmem_limit = int(min(cap, max(32 * 1024 * 1024,
                                  vmem_need + 4 * 1024 * 1024)))

    # --- x padding: skipped entirely when already aligned + in mm dtype ------
    if n_pad == n and e_pad == e and x.dtype == jnp.dtype(mm_dtype):
        xp = x
    else:
        xp = jnp.zeros((n_pad, e_pad), mm_dtype).at[:n, :e].set(
            x.astype(mm_dtype))

    out = pl.pallas_call(
        _make_kernel(p, p_pad, mm_dtype),
        out_shape=jax.ShapeDtypeStruct((n_pad, p_pad), out_dtype),
        grid_spec=pltpu.PrefetchScalarGridSpec(
            num_scalar_prefetch=0,
            grid=grid,
            in_specs=[
                # streamed activations tile
                pl.BlockSpec((br, tk), lambda i, k: (i, k)),
                # W1 tile along the K axis (double-buffered by default)
                pl.BlockSpec((tk, p_pad), lambda i, k: (k, 0)),
                # invariant W2: single-buffered to save VMEM
                pl.BlockSpec((p_pad, p_pad), lambda i, k: (0, 0),
                             pipeline_mode=pl.Buffered(1)),
                # packed b1 / b2 / gamma / beta (one DMA)
                pl.BlockSpec((4, p_pad), lambda i, k: (0, 0),
                             pipeline_mode=pl.Buffered(1)),
            ],
            out_specs=pl.BlockSpec((br, p_pad), lambda i, k: (i, 0)),
            scratch_shapes=[pltpu.VMEM((br, p_pad), jnp.float32)],
        ),
        compiler_params=pltpu.CompilerParams(
            dimension_semantics=("parallel", "arbitrary"),
            vmem_limit_bytes=vmem_limit,
        ),
    )(xp, w1p, w2p, packed)

    if n_pad == n and p_pad == p:
        return out
    return out[:n, :p]


def projection_head(x, w1, b1, w2, b2, gamma, beta, *,
                    matmul_dtype=jnp.bfloat16, **kwargs):
    """Convenience path: pad/cast params then run the fused kernel."""
    prepared = prepare_projection_params(
        w1, b1, w2, b2, gamma, beta, matmul_dtype=matmul_dtype)
    return projection_head_prepared(x, prepared, **kwargs)


def init_params(key, embedding_dim, projection_dim):
    """Parameter init matching nn.Linear / nn.LayerNorm shapes (stored (in, out))."""
    k1, k2, k3, k4 = jax.random.split(key, 4)
    bound1 = 1.0 / math.sqrt(embedding_dim)
    bound2 = 1.0 / math.sqrt(projection_dim)
    w1 = jax.random.uniform(k1, (embedding_dim, projection_dim),
                            jnp.float32, -bound1, bound1)
    b1 = jax.random.uniform(k2, (projection_dim,), jnp.float32, -bound1, bound1)
    w2 = jax.random.uniform(k3, (projection_dim, projection_dim),
                            jnp.float32, -bound2, bound2)
    b2 = jax.random.uniform(k4, (projection_dim,), jnp.float32, -bound2, bound2)
    gamma = jnp.ones((projection_dim,), jnp.float32)
    beta = jnp.zeros((projection_dim,), jnp.float32)
    return w1, b1, w2, b2, gamma, beta


def _reference(x, w1, b1, w2, b2, gamma, beta):
    proj = x @ w1 + b1
    h = 0.5 * proj * (1.0 + lax.erf(proj / math.sqrt(2.0)))
    y = h @ w2 + b2 + proj
    mean = y.mean(-1, keepdims=True)
    var = ((y - mean) ** 2).mean(-1, keepdims=True)
    return (y - mean) / jnp.sqrt(var + 1e-5) * gamma + beta


if __name__ == "__main__":
    batch = 16
    embedding_dim = 200   # pads to 256 lanes (exercises E padding / K tiling)
    projection_dim = 80   # pads to 128 lanes (exercises masked LayerNorm)

    key = jax.random.PRNGKey(0)
    kx, kp = jax.random.split(key)
    x = jax.random.normal(kx, (batch, embedding_dim), jnp.float32)
    params = init_params(kp, embedding_dim, projection_dim)

    ref = _reference(x, *params)

    # Default path: bf16 MXU operands, f32 accumulation (relaxed tolerance),
    # parameter padding hoisted (prepared once, reused).
    prepared_bf16 = prepare_projection_params(*params, matmul_dtype=jnp.bfloat16)
    out = jax.block_until_ready(projection_head_prepared(x, prepared_bf16))
    assert out.shape == (batch, projection_dim)
    assert jnp.allclose(out, ref, atol=3e-2, rtol=3e-2), "bf16 path mismatch"

    # f32 path with a small K tile to exercise the embedding-axis accumulator.
    out_f32 = jax.block_until_ready(
        projection_head(x, *params, matmul_dtype=jnp.float32, block_k=128))
    assert jnp.allclose(out_f32, ref, atol=5e-3, rtol=5e-3), "f32 path mismatch"

    print("KERNEL_OK")
</pallas_src>

<mosaic_0001>
module attributes {stable_mosaic.version = 11 : i64} {
  func.func @kernel(%arg0: i32, %arg1: i32, %arg2: memref<16x256xbf16, #tpu.memory_space<vmem>>, %arg3: memref<256x128xbf16, #tpu.memory_space<vmem>>, %arg4: memref<128x128xbf16, #tpu.memory_space<vmem>>, %arg5: memref<4x128xf32, #tpu.memory_space<vmem>>, %arg6: memref<16x128xf32, #tpu.memory_space<vmem>>, %arg7: memref<16x128xf32, #tpu.memory_space<vmem>>) attributes {dimension_semantics = [#tpu.dimension_semantics<parallel>, #tpu.dimension_semantics<arbitrary>], iteration_bounds = array<i64: 1, 1>, scalar_prefetch = 0 : i64, scratch_operands = 1 : i64, tpu.core_type = #tpu.core_type<tc>, window_params = [{transform_indices = @transform_0, window_bounds = array<i64: 16, 256>}, {transform_indices = @transform_1, window_bounds = array<i64: 256, 128>}, {pipeline_mode = #tpu.pipeline_mode<synchronous>, transform_indices = @transform_2, window_bounds = array<i64: 128, 128>}, {pipeline_mode = #tpu.pipeline_mode<synchronous>, transform_indices = @transform_3, window_bounds = array<i64: 4, 128>}, {transform_indices = @transform_4, window_bounds = array<i64: 16, 128>}]} {
    %c0 = arith.constant 0 : index
    %c0_0 = arith.constant 0 : index
    %0 = vector.load %arg2[%c0, %c0_0] : memref<16x256xbf16, #tpu.memory_space<vmem>>, vector<16x256xbf16>
    %c0_1 = arith.constant 0 : index
    %c0_2 = arith.constant 0 : index
    %1 = vector.load %arg3[%c0_1, %c0_2] : memref<256x128xbf16, #tpu.memory_space<vmem>>, vector<256x128xbf16>
    %cst = arith.constant dense<0.000000e+00> : vector<16x128xf32>
    %2 = tpu.matmul %0, %1, %cst {dimension_numbers = #tpu.dot_dimension_numbers<[1], [0], [0], [1], [0, 0, 1, 1], [], []>} : vector<16x256xbf16>, vector<256x128xbf16>, vector<16x128xf32> -> vector<16x128xf32>
    %c0_i32 = arith.constant 0 : i32
    %3 = arith.cmpi eq, %arg1, %c0_i32 : i32
    %4 = arith.extui %3 : i1 to i32
    %c0_i32_3 = arith.constant 0 : i32
    %5 = arith.cmpi ne, %4, %c0_i32_3 : i32
    scf.if %5 {
      %c0_8 = arith.constant 0 : index
      %c0_9 = arith.constant 0 : index
      %12 = vector.load %arg7[%c0_8, %c0_9] : memref<16x128xf32, #tpu.memory_space<vmem>>, vector<16x128xf32>
      tpu.vector_store %arg7[%c0_8, %c0_9], %2 {strides = array<i32>} : memref<16x128xf32, #tpu.memory_space<vmem>>, vector<16x128xf32>,
    } else {
    }
    %c0_i32_4 = arith.constant 0 : i32
    %6 = arith.cmpi sgt, %arg1, %c0_i32_4 : i32
    %7 = arith.extui %6 : i1 to i32
    %c0_i32_5 = arith.constant 0 : i32
    %8 = arith.cmpi ne, %7, %c0_i32_5 : i32
    scf.if %8 {
      %c0_8 = arith.constant 0 : index
      %c0_9 = arith.constant 0 : index
      %12 = vector.load %arg7[%c0_8, %c0_9] : memref<16x128xf32, #tpu.memory_space<vmem>>, vector<16x128xf32>
      %13 = arith.addf %12, %2 : vector<16x128xf32>
      %c0_10 = arith.constant 0 : index
      %c0_11 = arith.constant 0 : index
      %14 = vector.load %arg7[%c0_10, %c0_11] : memref<16x128xf32, #tpu.memory_space<vmem>>, vector<16x128xf32>
      tpu.vector_store %arg7[%c0_10, %c0_11], %13 {strides = array<i32>} : memref<16x128xf32, #tpu.memory_space<vmem>>, vector<16x128xf32>,
    } else {
    }
    %c0_i32_6 = arith.constant 0 : i32
    %9 = arith.cmpi eq, %arg1, %c0_i32_6 : i32
    %10 = arith.extui %9 : i1 to i32
    %c0_i32_7 = arith.constant 0 : i32
    %11 = arith.cmpi ne, %10, %c0_i32_7 : i32
    scf.if %11 {
      %c0_8 = arith.constant 0 : index
      %c0_9 = arith.constant 0 : index
      %12 = vector.load %arg5[%c0_8, %c0_9] : memref<4x128xf32, #tpu.memory_space<vmem>>, vector<1x128xf32>
      %c1 = arith.constant 1 : index
      %c0_10 = arith.constant 0 : index
      %13 = vector.load %arg5[%c1, %c0_10] : memref<4x128xf32, #tpu.memory_space<vmem>>, vector<1x128xf32>
      %c2 = arith.constant 2 : index
      %c0_11 = arith.constant 0 : index
      %14 = vector.load %arg5[%c2, %c0_11] : memref<4x128xf32, #tpu.memory_space<vmem>>, vector<1x128xf32>
      %c3 = arith.constant 3 : index
      %c0_12 = arith.constant 0 : index
      %15 = vector.load %arg5[%c3, %c0_12] : memref<4x128xf32, #tpu.memory_space<vmem>>, vector<1x128xf32>
      %c0_13 = arith.constant 0 : index
      %c0_14 = arith.constant 0 : index
      %16 = vector.load %arg7[%c0_13, %c0_14] : memref<16x128xf32, #tpu.memory_space<vmem>>, vector<16x128xf32>
      %17 = vector.broadcast %12 : vector<1x128xf32> to vector<16x128xf32>
      %18 = arith.addf %16, %17 : vector<16x128xf32>
      %cst_15 = arith.constant 5.000000e-01 : f32
      %19 = vector.broadcast %cst_15 : f32 to vector<16x128xf32>
      %20 = arith.mulf %19, %18 : vector<16x128xf32>
      %cst_16 = arith.constant 0.707106769 : f32
      %21 = vector.broadcast %cst_16 : f32 to vector<16x128xf32>
      %22 = arith.mulf %18, %21 : vector<16x128xf32>
      %23 = math.erf %22 : vector<16x128xf32>
      %cst_17 = arith.constant 1.000000e+00 : f32
      %24 = vector.broadcast %cst_17 : f32 to vector<16x128xf32>
      %25 = arith.addf %24, %23 : vector<16x128xf32>
      %26 = arith.mulf %20, %25 : vector<16x128xf32>
      %27 = arith.truncf %26 : vector<16x128xf32> to vector<16x128xbf16>
      %c0_18 = arith.constant 0 : index
      %c0_19 = arith.constant 0 : index
      %28 = vector.load %arg4[%c0_18, %c0_19] : memref<128x128xbf16, #tpu.memory_space<vmem>>, vector<128x128xbf16>
      %cst_20 = arith.constant dense<0.000000e+00> : vector<16x128xf32>
      %29 = tpu.matmul %27, %28, %cst_20 {dimension_numbers = #tpu.dot_dimension_numbers<[1], [0], [0], [1], [0, 0, 1, 1], [], []>} : vector<16x128xbf16>, vector<128x128xbf16>, vector<16x128xf32> -> vector<16x128xf32>
      %30 = vector.broadcast %13 : vector<1x128xf32> to vector<16x128xf32>
      %31 = arith.addf %29, %30 : vector<16x128xf32>
      %32 = arith.addf %31, %18 : vector<16x128xf32>
      %cst_21 = arith.constant dense<0.000000e+00> : vector<16xf32>
      %33 = vector.multi_reduction <add>, %32, %cst_21 [1] : vector<16x128xf32> to vector<16xf32>
      %34 = vector.shape_cast %33 : vector<16xf32> to vector<16x1xf32>
      %cst_22 = arith.constant 1.250000e-02 : f32
      %35 = vector.broadcast %cst_22 : f32 to vector<16x1xf32>
      %36 = arith.mulf %34, %35 : vector<16x1xf32>
      %37 = vector.broadcast %36 : vector<16x1xf32> to vector<16x128xf32>
      %38 = arith.subf %32, %37 : vector<16x128xf32>
      %39 = tpu.iota {dimensions = array<i32: 1>} : vector<16x128xi32>
      %c80_i32 = arith.constant 80 : i32
      %40 = vector.broadcast %c80_i32 : i32 to vector<16x128xi32>
      %41 = arith.cmpi slt, %39, %40 : vector<16x128xi32>
      %42 = arith.mulf %38, %38 : vector<16x128xf32>
      %cst_23 = arith.constant 0.000000e+00 : f32
      %43 = vector.broadcast %cst_23 : f32 to vector<16x128xf32>
      %44 = arith.select %41, %42, %43 : vector<16x128xi1>, vector<16x128xf32>
      %cst_24 = arith.constant dense<0.000000e+00> : vector<16xf32>
      %45 = vector.multi_reduction <add>, %44, %cst_24 [1] : vector<16x128xf32> to vector<16xf32>
      %46 = vector.shape_cast %45 : vector<16xf32> to vector<16x1xf32>
      %cst_25 = arith.constant 1.250000e-02 : f32
      %47 = vector.broadcast %cst_25 : f32 to vector<16x1xf32>
      %48 = arith.mulf %46, %47 : vector<16x1xf32>
      %cst_26 = arith.constant 9.99999974E-6 : f32
      %49 = vector.broadcast %cst_26 : f32 to vector<16x1xf32>
      %50 = arith.addf %48, %49 : vector<16x1xf32>
      %51 = math.rsqrt %50 : vector<16x1xf32>
      %52 = vector.broadcast %51 : vector<16x1xf32> to vector<16x128xf32>
      %53 = arith.mulf %38, %52 : vector<16x128xf32>
      %54 = vector.broadcast %14 : vector<1x128xf32> to vector<16x128xf32>
      %55 = arith.mulf %53, %54 : vector<16x128xf32>
      %56 = vector.broadcast %15 : vector<1x128xf32> to vector<16x128xf32>
      %57 = arith.addf %55, %56 : vector<16x128xf32>
      %c0_27 = arith.constant 0 : index
      %c0_28 = arith.constant 0 : index
      %58 = vector.load %arg6[%c0_27, %c0_28] : memref<16x128xf32, #tpu.memory_space<vmem>>, vector<16x128xf32>
      tpu.vector_store %arg6[%c0_27, %c0_28], %57 {strides = array<i32>} : memref<16x128xf32, #tpu.memory_space<vmem>>, vector<16x128xf32>,
    } else {
    }
    return
  }
  func.func @transform_0(%arg0: i32, %arg1: i32) -> (i32, i32) {
    %c0_i32 = arith.constant 0 : i32
    return %arg0, %arg1 : i32, i32
  }
  func.func @transform_1(%arg0: i32, %arg1: i32) -> (i32, i32) {
    %c0_i32 = arith.constant 0 : i32
    %c0_i32_0 = arith.constant 0 : i32
    return %arg1, %c0_i32 : i32, i32
  }
  func.func @transform_2(%arg0: i32, %arg1: i32) -> (i32, i32) {
    %c0_i32 = arith.constant 0 : i32
    %c0_i32_0 = arith.constant 0 : i32
    %c0_i32_1 = arith.constant 0 : i32
    return %c0_i32, %c0_i32_0 : i32, i32
  }
  func.func @transform_3(%arg0: i32, %arg1: i32) -> (i32, i32) {
    %c0_i32 = arith.constant 0 : i32
    %c0_i32_0 = arith.constant 0 : i32
    %c0_i32_1 = arith.constant 0 : i32
    return %c0_i32, %c0_i32_0 : i32, i32
  }
  func.func @transform_4(%arg0: i32, %arg1: i32) -> (i32, i32) {
    %c0_i32 = arith.constant 0 : i32
    %c0_i32_0 = arith.constant 0 : i32
    return %arg0, %c0_i32 : i32, i32
  }
}

</mosaic_0001>

<llo_original>
// kernel: tpu_custom_call.1
$region0: #{tpu_custom_call.1}
  #allocation0 [shape = 'u32[]', space=smem, size = 0x4, offset = 0x4, fixed_abs, tag = 'smem constant byte address 0x4 - core index']
  #allocation1 [shape = 'u32[144,128]{1,0:T(1,128)}', space=vmem, size = 0x12000, scoped, tag = 'internal scratch']
  #allocation2 [shape = 'f32[16,128]{1,0:T(8,128)}', space=vmem, size = 0x2000, scoped, tag = 'scratch operand']
  %s0 = inlined_call_operand.hbm [shape: bf16[16,256], index: 0, kind: input, shape index: {}]
  %s1 = inlined_call_operand.hbm [shape: bf16[256,128], index: 1, kind: input, shape index: {}]
  %s2 = inlined_call_operand.hbm [shape: bf16[128,128], index: 2, kind: input, shape index: {}]
  %s3 = inlined_call_operand.vmem [shape: f32[4,128], index: 3, kind: input, shape index: {}]
  %s4 = inlined_call_operand.hbm [shape: f32[16,128], index: 4, kind: output, shape index: {}]
  %s5 = sld [smem:[#allocation0]]
  $region50: #{tpu_custom_call.1} parent=0
    _
  %s7 = ssub.s32 1, %s5
  %s8 = scalar_select 0, %s7, %s5
  $region1: #{tpu_custom_call.1} parent=0
    #allocation3 [shape = 'u8[8192]{0}', space=vmem, size = 0x2000, scoped, tag = 'input window, operand 0, single buffered']
    #allocation4 [shape = 's32[1]{0}', space=sflag, size = 0x4, scoped, tag = 'scoped memory for tpu_custom_call.1']
    #allocation5 [shape = 's32[1]{0}', space=sflag, size = 0x4, scoped, tag = 'scoped memory for tpu_custom_call.1']
    #allocation6 [shape = 'u8[65536]{0}', space=vmem, size = 0x10000, scoped, tag = 'input window, operand 1, single buffered']
    #allocation7 [shape = 's32[1]{0}', space=sflag, size = 0x4, scoped, tag = 'scoped memory for tpu_custom_call.1']
    #allocation8 [shape = 'u8[32768]{0}', space=vmem, size = 0x8000, scoped, tag = 'input window, operand 2, single buffered']
    #allocation9 [shape = 'u8[8192]{0}', space=vmem, size = 0x2000, scoped, tag = 'output window, operand 0, single buffered']
    %9 = vsyncpa [#allocation4], 0
    %10 = vsyncpa [#allocation7], 0
    %11 = vsyncpa [#allocation5], 0
    // Predicated region
    $region2: #{tpu_custom_call.1} parent=1 // pred_check
      _
    $region3: #{tpu_custom_call.1} parent=1 // pred_check_branch
      %13 = sbr.rel (0) target = $region5
    $region4: #{tpu_custom_call.1} parent=1 // pred_region
      %s15 = ssub.s32 256, 256
      %16 = vsyncadd [#allocation4], %s15
      %s17 = sshll.u32 [#allocation3], 4
      %s18 = int_to_ptr.vmem [resolvable:$true] %s17
      %23 = dma.hbm_to_vmem [thread:$0]  %s0, 256, %s18, [#allocation4], 128, 128, 8
    $region5: #{tpu_custom_call.1} parent=1 // pred_fallthru
      _
    // Predicated region
    $region6: #{tpu_custom_call.1} parent=1 // pred_check
      _
    $region7: #{tpu_custom_call.1} parent=1 // pred_check_branch
      %25 = sbr.rel (0) target = $region9
    $region8: #{tpu_custom_call.1} parent=1 // pred_region
      %s27 = ssub.s32 2048, 2048
      %28 = vsyncadd [#allocation7], %s27
      %s29 = sshll.u32 [#allocation6], 4
      %s30 = int_to_ptr.vmem [resolvable:$true] %s29
      %35 = dma.hbm_to_vmem [thread:$0]  %s1, 2048, %s30, [#allocation7], 64, 64, 4
    $region9: #{tpu_custom_call.1} parent=1 // pred_fallthru
      _
    // Predicated region
    $region10: #{tpu_custom_call.1} parent=1 // pred_check
      _
    $region11: #{tpu_custom_call.1} parent=1 // pred_check_branch
      %37 = sbr.rel (0) target = $region13
    $region12: #{tpu_custom_call.1} parent=1 // pred_region
      %s39 = ssub.s32 1024, 1024
      %40 = vsyncadd [#allocation7], %s39
      %s41 = sshll.u32 [#allocation8], 4
      %s42 = int_to_ptr.vmem [resolvable:$true] %s41
      %47 = dma.hbm_to_vmem [thread:$0]  %s2, 1024, %s42, [#allocation7], 64, 64, 4
    $region13: #{tpu_custom_call.1} parent=1 // pred_fallthru
      _
    // Predicated region
    $region14: #{tpu_custom_call.1} parent=1 // pred_check
      _
    $region15: #{tpu_custom_call.1} parent=1 // pred_check_branch
      %49 = sbr.rel (0) target = $region17
    $region16: #{tpu_custom_call.1} parent=1 // pred_region
      _
    $region17: #{tpu_custom_call.1} parent=1 // pred_fallthru
      _
    // Predicated region
    $region18: #{tpu_custom_call.1} parent=1 // pred_check
      _
    $region19: #{tpu_custom_call.1} parent=1 // pred_check_branch
      %51 = sbr.rel (0) target = $region21
    $region20: #{tpu_custom_call.1} parent=1 // pred_region
      %52 = dma.done [#allocation4], 256
    $region21: #{tpu_custom_call.1} parent=1 // pred_fallthru
      _
    // Predicated region
    $region22: #{tpu_custom_call.1} parent=1 // pred_check
      _
    $region23: #{tpu_custom_call.1} parent=1 // pred_check_branch
      %54 = sbr.rel (0) target = $region25
    $region24: #{tpu_custom_call.1} parent=1 // pred_region
      %55 = dma.done [#allocation7], 2048
    $region25: #{tpu_custom_call.1} parent=1 // pred_fallthru
      _
    // Predicated region
    $region26: #{tpu_custom_call.1} parent=1 // pred_check
      _
    $region27: #{tpu_custom_call.1} parent=1 // pred_check_branch
      %57 = sbr.rel (0) target = $region29
    $region28: #{tpu_custom_call.1} parent=1 // pred_region
      %58 = dma.done [#allocation7], 1024
    $region29: #{tpu_custom_call.1} parent=1 // pred_fallthru
      _
    %v60 = vld [vmem:[#allocation3] sm:$0xff]
    %v61 = vld [vmem:[#allocation3 + $0x8] sm:$0xff]
    %v62 = vld [vmem:[#allocation6] sm:$0xf]
    %v63 = vld [vmem:[#allocation6 + $0x4] sm:$0xf]
    %v64 = vld [vmem:[#allocation6 + $0x8] sm:$0xf]
    %v65 = vld [vmem:[#allocation6 + $0xc] sm:$0xf]
    %v66 = vld [vmem:[#allocation6 + $0x10] sm:$0xf]
    %v67 = vld [vmem:[#allocation6 + $0x14] sm:$0xf]
    %v68 = vld [vmem:[#allocation6 + $0x18] sm:$0xf]
    %v69 = vld [vmem:[#allocation6 + $0x1c] sm:$0xf]
    %v70 = vld [vmem:[#allocation6 + $0x20] sm:$0xf]
    %v71 = vld [vmem:[#allocation6 + $0x24] sm:$0xf]
    %v72 = vld [vmem:[#allocation6 + $0x28] sm:$0xf]
    %v73 = vld [vmem:[#allocation6 + $0x2c] sm:$0xf]
    %v74 = vld [vmem:[#allocation6 + $0x30] sm:$0xf]
    %v75 = vld [vmem:[#allocation6 + $0x34] sm:$0xf]
    %v76 = vld [vmem:[#allocation6 + $0x38] sm:$0xf]
    %v77 = vld [vmem:[#allocation6 + $0x3c] sm:$0xf]
    %v78 = vld [vmem:[#allocation6 + $0x40] sm:$0xf]
    %v79 = vld [vmem:[#allocation6 + $0x44] sm:$0xf]
    %v80 = vld [vmem:[#allocation6 + $0x48] sm:$0xf]
    %v81 = vld [vmem:[#allocation6 + $0x4c] sm:$0xf]
    %v82 = vld [vmem:[#allocation6 + $0x50] sm:$0xf]
    %v83 = vld [vmem:[#allocation6 + $0x54] sm:$0xf]
    %v84 = vld [vmem:[#allocation6 + $0x58] sm:$0xf]
    %v85 = vld [vmem:[#allocation6 + $0x5c] sm:$0xf]
    %v86 = vld [vmem:[#allocation6 + $0x60] sm:$0xf]
    %v87 = vld [vmem:[#allocation6 + $0x64] sm:$0xf]
    %v88 = vld [vmem:[#allocation6 + $0x68] sm:$0xf]
    %v89 = vld [vmem:[#allocation6 + $0x6c] sm:$0xf]
    %v90 = vld [vmem:[#allocation6 + $0x70] sm:$0xf]
    %v91 = vld [vmem:[#allocation6 + $0x74] sm:$0xf]
    %v92 = vld [vmem:[#allocation6 + $0x78] sm:$0xf]
    %v93 = vld [vmem:[#allocation6 + $0x7c] sm:$0xf]
    %v96 = vunpack.c.l.b16 %v60
    %v97 = vunpack.c.h.b16 %v60
    %v98 = vunpack.c.l.b16 %v61
    %v99 = vunpack.c.h.b16 %v61
    %v100 = vpack.c.b16 %v98, %v96
    %v101 = vpack.c.b16 %v99, %v97
    %v136 = vunpack.c.l.b16 %v62
    %v137 = vunpack.c.l.b16 %v63
    %v138 = vunpack.c.l.b16 %v64
    %v139 = vunpack.c.l.b16 %v65
    %v140 = vunpack.c.l.b16 %v66
    %v141 = vunpack.c.l.b16 %v67
    %v142 = vunpack.c.l.b16 %v68
    %v143 = vunpack.c.l.b16 %v69
    %v144 = vunpack.c.l.b16 %v70
    %v145 = vunpack.c.l.b16 %v71
    %v146 = vunpack.c.l.b16 %v72
    %v147 = vunpack.c.l.b16 %v73
    %v148 = vunpack.c.l.b16 %v74
    %v149 = vunpack.c.l.b16 %v75
    %v150 = vunpack.c.l.b16 %v76
    %v151 = vunpack.c.l.b16 %v77
    %v152 = vunpack.c.l.b16 %v78
    %v153 = vunpack.c.l.b16 %v79
    %v154 = vunpack.c.l.b16 %v80
    %v155 = vunpack.c.l.b16 %v81
    %v156 = vunpack.c.l.b16 %v82
    %v157 = vunpack.c.l.b16 %v83
    %v158 = vunpack.c.l.b16 %v84
    %v159 = vunpack.c.l.b16 %v85
    %v160 = vunpack.c.l.b16 %v86
    %v161 = vunpack.c.l.b16 %v87
    %v162 = vunpack.c.l.b16 %v88
    %v163 = vunpack.c.l.b16 %v89
    %v164 = vunpack.c.l.b16 %v90
    %v165 = vunpack.c.l.b16 %v91
    %v166 = vunpack.c.l.b16 %v92
    %v167 = vunpack.c.l.b16 %v93
    %v168 = vpack.c.b16 %v137, %v136
    %v169 = vpack.c.b16 %v139, %v138
    %v170 = vpack.c.b16 %v141, %v140
    %v171 = vpack.c.b16 %v143, %v142
    %v172 = vpack.c.b16 %v145, %v144
    %v173 = vpack.c.b16 %v147, %v146
    %v174 = vpack.c.b16 %v149, %v148
    %v175 = vpack.c.b16 %v151, %v150
    %v176 = vpack.c.b16 %v153, %v152
    %v177 = vpack.c.b16 %v155, %v154
    %v178 = vpack.c.b16 %v157, %v156
    %v179 = vpack.c.b16 %v159, %v158
    %v180 = vpack.c.b16 %v161, %v160
    %v181 = vpack.c.b16 %v163, %v162
    %v182 = vpack.c.b16 %v165, %v164
    %v183 = vpack.c.b16 %v167, %v166
    %200 = vmatprep.subr.bf16.mxu0 0
    %201 = vmatpush1.bf16.msra.mxu0 %v175
    %202 = vmatprep.subr.bf16.mxu0 0
    %203 = vmatpush1.bf16.msra.mxu0 %v174
    %204 = vmatprep.subr.bf16.mxu0 0
    %205 = vmatpush1.bf16.msra.mxu0 %v173
    %206 = vmatprep.subr.bf16.mxu0 0
    %207 = vmatpush1.bf16.msra.mxu0 %v172
    %208 = vmatprep.subr.bf16.mxu0 0
    %209 = vmatpush1.bf16.msra.mxu0 %v171
    %210 = vmatprep.subr.bf16.mxu0 0
    %211 = vmatpush1.bf16.msra.mxu0 %v170
    %212 = vmatprep.subr.bf16.mxu0 0
    %213 = vmatpush1.bf16.msra.mxu0 %v169
    %214 = vmatprep.subr.bf16.mxu0 0
    %215 = vmatpush1.bf16.msra.mxu0 %v168
    %216 = vmatprep.subr.bf16.mxu0 0
    %217 = vmatpush2.bf16.msra.mxu0 %v183
    %218 = vmatprep.subr.bf16.mxu0 0
    %219 = vmatpush2.bf16.msra.mxu0 %v182
    %220 = vmatprep.subr.bf16.mxu0 0
    %221 = vmatpush2.bf16.msra.mxu0 %v181
    %222 = vmatprep.subr.bf16.mxu0 0
    %223 = vmatpush2.bf16.msra.mxu0 %v180
    %224 = vmatprep.subr.bf16.mxu0 0
    %225 = vmatpush2.bf16.msra.mxu0 %v179
    %226 = vmatprep.subr.bf16.mxu0 0
    %227 = vmatpush2.bf16.msra.mxu0 %v178
    %228 = vmatprep.subr.bf16.mxu0 0
    %229 = vmatpush2.bf16.msra.mxu0 %v177
    %230 = vmatprep.subr.bf16.mxu0 0
    %231 = vmatpush2.bf16.msra.mxu0 %v176
    %232 = vmatprep.mubr.bf16.mxu0 %v101
    %233 = vmatmul.mubr.bf16.gmra.mxu0 %v100
    %v234 = vpop.f32.mrf.mxu0
    %v235 = vadd.f32 0.0, %v234
    %v236 = vpop.f32.mrf.mxu0
    %v237 = vpop.f32.mrf.mxu0
    %v238 = vadd.f32 0.0, %v237
    %v239 = vpop.f32.mrf.mxu0
    %240 = vdwg.mxu0
    %p241 = scmp.eq.s32.totalorder 0, 0
    // Predicated region
    $region30: #{tpu_custom_call.1} parent=1 // pred_check
      %p242 = pneg %p241
    $region31: #{tpu_custom_call.1} parent=1 // pred_check_branch
      %244 = sbr.rel (%p242) target = $region33
    $region32: #{tpu_custom_call.1} parent=1 // pred_region
      %245 = vst [vmem:[#allocation2] sm:$0xff] %v235
      %246 = vst [vmem:[#allocation2 + $0x8] sm:$0xff] %v238
    $region33: #{tpu_custom_call.1} parent=1 // pred_fallthru
      _
    %p247 = scmp.gt.s32.totalorder 0, 0
    // Predicated region
    $region34: #{tpu_custom_call.1} parent=1 // pred_check
      %p248 = pneg %p247
    $region35: #{tpu_custom_call.1} parent=1 // pred_check_branch
      %250 = sbr.rel (%p248) target = $region37
    $region36: #{tpu_custom_call.1} parent=1 // pred_region
      %v251 = vld [vmem:[#allocation2] sm:$0xff]
      %v252 = vld [vmem:[#allocation2 + $0x8] sm:$0xff]
      %v253 = vadd.f32 %v251, %v235
      %v254 = vadd.f32 %v252, %v238
      %255 = vst [vmem:[#allocation2] sm:$0xff] %v253
      %256 = vst [vmem:[#allocation2 + $0x8] sm:$0xff] %v254
    $region37: #{tpu_custom_call.1} parent=1 // pred_fallthru
      _
    // Predicated region
    $region38: #{tpu_custom_call.1} parent=1 // pred_check
      %p257 = pneg %p241
    $region39: #{tpu_custom_call.1} parent=1 // pred_check_branch
      %259 = sbr.rel (%p257) target = $region41
    $region40: #{tpu_custom_call.1} parent=1 // pred_region
      %v260 = vld [vmem:[%s3] sm:$0x1]
      %v261 = vld [vmem:[%s3 + $0x1] sm:$0x1]
      %v262 = vld [vmem:[%s3 + $0x2] sm:$0x1]
      %v263 = vld [vmem:[%s3 + $0x3] sm:$0x1]
      %v264 = vld [vmem:[#allocation2] sm:$0xff]
      %v265 = vld [vmem:[#allocation2 + $0x8] sm:$0xff]
      %v266 = vlaneseq
      %v267 = vshrl.u32 %v266, 7
      %v268 = vsub.s32 0, %v267
      %v269 = vrot.slane %v260, %v268
      %v270 = vadd.f32 %v264, %v269
      %v271 = vadd.f32 %v265, %v269
      %v272 = vmul.f32 %v270, 0.5
      %v273 = vmul.f32 %v271, 0.5
      %v274 = vmul.f32 %v270, 0.70710677
      %v275 = vmul.f32 %v271, 0.70710677
      %v276 = verf.f32.pop %v274
      %v277 = verf.f32.pop %v275
      %v278 = vadd.f32 %v276, 1.0
      %v279 = vadd.f32 %v277, 1.0
      %v280 = vmul.f32 %v272, %v278
      %v281 = vmul.f32 %v273, %v279
      %v282 = vpack.c.bf16 %v281, %v280
      %v283 = vld [vmem:[#allocation8] sm:$0xf]
      %v284 = vld [vmem:[#allocation8 + $0x4] sm:$0xf]
      %v285 = vld [vmem:[#allocation8 + $0x8] sm:$0xf]
      %v286 = vld [vmem:[#allocation8 + $0xc] sm:$0xf]
      %v287 = vld [vmem:[#allocation8 + $0x10] sm:$0xf]
      %v288 = vld [vmem:[#allocation8 + $0x14] sm:$0xf]
      %v289 = vld [vmem:[#allocation8 + $0x18] sm:$0xf]
      %v290 = vld [vmem:[#allocation8 + $0x1c] sm:$0xf]
      %v291 = vld [vmem:[#allocation8 + $0x20] sm:$0xf]
      %v292 = vld [vmem:[#allocation8 + $0x24] sm:$0xf]
      %v293 = vld [vmem:[#allocation8 + $0x28] sm:$0xf]
      %v294 = vld [vmem:[#allocation8 + $0x2c] sm:$0xf]
      %v295 = vld [vmem:[#allocation8 + $0x30] sm:$0xf]
      %v296 = vld [vmem:[#allocation8 + $0x34] sm:$0xf]
      %v297 = vld [vmem:[#allocation8 + $0x38] sm:$0xf]
      %v298 = vld [vmem:[#allocation8 + $0x3c] sm:$0xf]
      %v299 = vlaneseq
      %v300 = vshrl.u32 %v299, 7
      %v301 = vsub.s32 0, %v300
      %v302 = vrot.slane %v261, %v301
      %v319 = vunpack.c.l.b16 %v283
      %v320 = vunpack.c.l.b16 %v284
      %v321 = vunpack.c.l.b16 %v285
      %v322 = vunpack.c.l.b16 %v286
      %v323 = vunpack.c.l.b16 %v287
      %v324 = vunpack.c.l.b16 %v288
      %v325 = vunpack.c.l.b16 %v289
      %v326 = vunpack.c.l.b16 %v290
      %v327 = vunpack.c.l.b16 %v291
      %v328 = vunpack.c.l.b16 %v292
      %v329 = vunpack.c.l.b16 %v293
      %v330 = vunpack.c.l.b16 %v294
      %v331 = vunpack.c.l.b16 %v295
      %v332 = vunpack.c.l.b16 %v296
      %v333 = vunpack.c.l.b16 %v297
      %v334 = vunpack.c.l.b16 %v298
      %v335 = vpack.c.b16 %v320, %v319
      %v336 = vpack.c.b16 %v322, %v321
      %v337 = vpack.c.b16 %v324, %v323
      %v338 = vpack.c.b16 %v326, %v325
      %v339 = vpack.c.b16 %v328, %v327
      %v340 = vpack.c.b16 %v330, %v329
      %v341 = vpack.c.b16 %v332, %v331
      %v342 = vpack.c.b16 %v334, %v333
      %351 = vmatprep.subr.bf16.mxu0 0
      %352 = vmatpush1.bf16.msra.mxu0 %v342
      %353 = vmatprep.subr.bf16.mxu0 0
      %354 = vmatpush1.bf16.msra.mxu0 %v341
      %355 = vmatprep.subr.bf16.mxu0 0
      %356 = vmatpush1.bf16.msra.mxu0 %v340
      %357 = vmatprep.subr.bf16.mxu0 0
      %358 = vmatpush1.bf16.msra.mxu0 %v339
      %359 = vmatprep.subr.bf16.mxu0 0
      %360 = vmatpush1.bf16.msra.mxu0 %v338
      %361 = vmatprep.subr.bf16.mxu0 0
      %362 = vmatpush1.bf16.msra.mxu0 %v337
      %363 = vmatprep.subr.bf16.mxu0 0
      %364 = vmatpush1.bf16.msra.mxu0 %v336
      %365 = vmatprep.subr.bf16.mxu0 0
      %366 = vmatpush1.bf16.msra.mxu0 %v335
      %367 = vmatprep.subr.bf16.mxu0 0
      %368 = vmatpush2.bf16.msra.mxu0 0
      %369 = vmatprep.subr.bf16.mxu0 0
      %370 = vmatpush2.bf16.msra.mxu0 0
      %371 = vmatprep.subr.bf16.mxu0 0
      %372 = vmatpush2.bf16.msra.mxu0 0
      %373 = vmatprep.subr.bf16.mxu0 0
      %374 = vmatpush2.bf16.msra.mxu0 0
      %375 = vmatprep.subr.bf16.mxu0 0
      %376 = vmatpush2.bf16.msra.mxu0 0
      %377 = vmatprep.subr.bf16.mxu0 0
      %378 = vmatpush2.bf16.msra.mxu0 0
      %379 = vmatprep.subr.bf16.mxu0 0
      %380 = vmatpush2.bf16.msra.mxu0 0
      %381 = vmatprep.subr.bf16.mxu0 0
      %382 = vmatpush2.bf16.msra.mxu0 0
      %383 = vmatprep.mubr.bf16.mxu0 0
      %384 = vmatmul.mubr.bf16.gmra.mxu0 %v282
      %v385 = vpop.f32.mrf.mxu0
      %v386 = vadd.f32 %v302, %v385
      %v387 = vpop.f32.mrf.mxu0
      %v388 = vpop.f32.mrf.mxu0
      %v389 = vadd.f32 %v302, %v388
      %v390 = vpop.f32.mrf.mxu0
      %391 = vdwg.mxu0
      %v392 = vadd.f32 %v386, %v270
      %v393 = vadd.f32 %v389, %v271
      %394 = vadd.xlane.f32.xlu0 %v392
      %v395 = vpop.xlane.xlu0 %394
      %396 = vadd.xlane.f32.xlu0 %v393
      %v397 = vpop.xlane.xlu0 %396
      %v398 = vmul.f32 %v395, 0.0125
      %v399 = vmul.f32 %v397, 0.0125
      %v400 = vsub.f32 %v392, %v398
      %v401 = vsub.f32 %v393, %v399
      %v402 = vlaneseq
      %v403 = vand.u32 %v402, 127
      %vm404 = vcmp.lt.s32.totalorder %v403, 80
      %v405 = vmul.f32 %v400, %v400
      %v406 = vmul.f32 %v401, %v401
      %v407 = vsel %vm404, %v405, 0.0
      %v408 = vsel %vm404, %v406, 0.0
      %409 = vadd.xlane.f32.xlu0 %v407
      %v410 = vpop.xlane.xlu0 %409
      %411 = vadd.xlane.f32.xlu0 %v408
      %v412 = vpop.xlane.xlu0 %411
      %v413 = vmul.f32 %v410, 0.0125
      %v414 = vmul.f32 %v412, 0.0125
      %v415 = vadd.f32 %v413, 1e-05
      %v416 = vadd.f32 %v414, 1e-05
      %v417 = vrsqrt.pop %v415
      %v418 = vrsqrt.pop %v416
      %v419 = vmul.f32 %v400, %v417
      %v420 = vmul.f32 %v401, %v418
      %v421 = vlaneseq
      %v422 = vshrl.u32 %v421, 7
      %v423 = vsub.s32 0, %v422
      %v424 = vrot.slane %v262, %v423
      %v425 = vmul.f32 %v419, %v424
      %v426 = vmul.f32 %v420, %v424
      %v427 = vlaneseq
      %v428 = vshrl.u32 %v427, 7
      %v429 = vsub.s32 0, %v428
      %v430 = vrot.slane %v263, %v429
      %v431 = vadd.f32 %v425, %v430
      %v432 = vadd.f32 %v426, %v430
      %433 = vst [vmem:[#allocation9] sm:$0xff] %v431
      %434 = vst [vmem:[#allocation9 + $0x8] sm:$0xff] %v432
    $region41: #{tpu_custom_call.1} parent=1 // pred_fallthru
      _
    // Predicated region
    $region42: #{tpu_custom_call.1} parent=1 // pred_check
      _
    $region43: #{tpu_custom_call.1} parent=1 // pred_check_branch
      %436 = sbr.rel (0) target = $region45
    $region44: #{tpu_custom_call.1} parent=1 // pred_region
      %s438 = ssub.s32 256, 256
      %439 = vsyncadd [#allocation5], %s438
      %s440 = sshll.u32 [#allocation9], 4
      %s441 = int_to_ptr.vmem [resolvable:$true] %s440
      %446 = dma.vmem_to_hbm [thread:$0]  %s441, 256, %s4, [#allocation5], 128, 128, 8
    $region45: #{tpu_custom_call.1} parent=1 // pred_fallthru
      _
    // Predicated region
    $region46: #{tpu_custom_call.1} parent=1 // pred_check
      _
    $region47: #{tpu_custom_call.1} parent=1 // pred_check_branch
      %448 = sbr.rel (0) target = $region49
    $region48: #{tpu_custom_call.1} parent=1 // pred_region
      %449 = dma.done [#allocation5], 256
    $region49: #{tpu_custom_call.1} parent=1 // pred_fallthru
      _
    %450 = vsyncpa [#allocation4], 1
    %451 = vsyncpa [#allocation7], 1
    %452 = vsyncpa [#allocation5], 1

</llo_original>
